<compile_context>
chip_gen: v6e
topology: v6e:2x2x1
jax: 0.10.0
libtpu: 0.0.40
codegen_flags: <defaults>
</compile_context>

<pallas_src>
import functools

import jax
import jax.numpy as jnp
import numpy as np
from jax import lax
from jax.experimental import pallas as pl
from jax.experimental.pallas import tpu as pltpu

KH = KW = 4
STRIDE = 2
PAD = 1


def _round_up(x, m):
    return (x + m - 1) // m * m


def _vmem_limit_bytes():
    """Generation-aware VMEM budget (v5e/v6e: 128 MiB, v7x: 64 MiB per TC)."""
    cap = 64 * 1024 * 1024  # conservative fallback, safe on every generation
    try:
        info = pltpu.get_tpu_info()
        cap_attr = getattr(info, "vmem_capacity_bytes", None)
        if cap_attr:
            cap = int(cap_attr)
    except Exception:
        pass
    return min(int(cap * 3 // 4), 100 * 1024 * 1024)


def _conv_gemm_kernel(patches_ref, w_ref, b_ref, out_ref, *, block_k, weight_resident):
    """One (M-tile, K-step) of: out = patches @ weight + bias.

    The f32 output block is the accumulator (same block index across the K axis).
    """
    k = pl.program_id(1)

    @pl.when(k == 0)
    def _init():
        # Seed the accumulator with the (broadcast) bias; only on the first K step.
        out_ref[...] = jnp.broadcast_to(b_ref[...], out_ref.shape)

    if weight_resident:
        # Weight block covers the whole (Kp, Np) matrix; slice the K chunk here.
        koff = pl.multiple_of(k * block_k, block_k)
        w = w_ref[pl.ds(koff, block_k), :]
    else:
        w = w_ref[...]

    out_ref[...] += jnp.dot(patches_ref[...], w, preferred_element_type=jnp.float32)


@functools.partial(jax.jit, static_argnames=("tm", "tk", "weight_resident"))
def downsample_forward(x, weight, bias, *, tm=1024, tk=512, weight_resident=None):
    """Pallas implementation of nn.Conv2d(Cin, Cout, kernel_size=4, stride=2, padding=1).

    x      : (N, Cin, H, W)    float32, NCHW (PyTorch convention)
    weight : (Cout, Cin, 4, 4) float32, OIHW (PyTorch convention)
    bias   : (Cout,)           float32
    returns: (N, Cout, H//2, W//2) float32
    """
    N, Cin, H, W = x.shape
    Cout = weight.shape[0]
    orig_dtype = x.dtype
    cdtype = jnp.bfloat16  # MXU-native compute dtype; accumulation stays f32

    Ho = (H + 2 * PAD - KH) // STRIDE + 1
    Wo = (W + 2 * PAD - KW) // STRIDE + 1

    # ---- im2col (channels-last): the inflated patches tensor is produced directly
    # in its final (M, K) layout, K ordered (kh, kw, Cin).  Only the 1x input is
    # transposed (NCHW -> NHWC). -------------------------------------------------
    xh = jnp.transpose(x, (0, 2, 3, 1)).astype(cdtype)                 # (N, H, W, Cin)
    xp = jnp.pad(xh, ((0, 0), (PAD, PAD), (PAD, PAD), (0, 0)))
    taps = []
    for kh in range(KH):
        for kw in range(KW):
            taps.append(
                xp[:, kh:kh + STRIDE * Ho:STRIDE, kw:kw + STRIDE * Wo:STRIDE, :]
            )
    patches = jnp.stack(taps, axis=3)                                  # (N, Ho, Wo, 16, Cin)
    patches = patches.reshape(N * Ho * Wo, KH * KW * Cin)              # (M, K)
    M, K = patches.shape

    # Weight flattened to (K, Cout) with the same (kh, kw, Cin) ordering.
    w_mat = jnp.transpose(weight, (2, 3, 1, 0)).reshape(K, Cout).astype(cdtype)

    # ---- tile sizes ------------------------------------------------------------
    Np = _round_up(Cout, 128)                 # single lane-dense Cout tile (j collapsed)
    TK = min(_round_up(tk, 128), _round_up(K, 128))
    Kp = _round_up(K, TK)
    TM = min(_round_up(tm, 8), _round_up(M, 8))

    if weight_resident is None:
        # Hold the full weight in VMEM when the (double-buffered) footprint is small.
        weight_resident = 2 * Kp * Np * 2 <= 16 * 1024 * 1024

    vmem_limit = _vmem_limit_bytes()

    def _footprint(tm_):
        f = 2 * tm_ * TK * 2                                  # patches blocks (bf16, 2x)
        f += 2 * tm_ * Np * 4                                 # output/accumulator (f32, 2x)
        f += (2 * Kp * Np * 2) if weight_resident else (2 * TK * Np * 2)
        f += 2 * Np * 4                                       # bias
        return f

    while TM > 64 and _footprint(TM) > (vmem_limit * 4) // 5:
        TM = max(64, _round_up(TM // 2, 8))

    Mp = _round_up(M, TM)

    # Zero-pad operands to tile multiples; padded K columns are zero on both sides
    # so they contribute nothing, padded M rows / N columns are sliced away.
    patches_p = jnp.pad(patches, ((0, Mp - M), (0, Kp - K)))
    w_p = jnp.pad(w_mat, ((0, Kp - K), (0, Np - Cout)))
    b_p = jnp.pad(bias.astype(jnp.float32).reshape(1, Cout), ((0, 0), (0, Np - Cout)))

    grid = (Mp // TM, Kp // TK)

    if weight_resident:
        w_spec = pl.BlockSpec((Kp, Np), lambda i, k: (0, 0))   # fetched once, stays in VMEM
    else:
        w_spec = pl.BlockSpec((TK, Np), lambda i, k: (k, 0))

    kernel = functools.partial(
        _conv_gemm_kernel, block_k=TK, weight_resident=weight_resident
    )

    out_flat = pl.pallas_call(
        kernel,
        out_shape=jax.ShapeDtypeStruct((Mp, Np), jnp.float32),
        grid_spec=pltpu.PrefetchScalarGridSpec(
            num_scalar_prefetch=0,
            grid=grid,
            in_specs=[
                pl.BlockSpec((TM, TK), lambda i, k: (i, k)),
                w_spec,
                pl.BlockSpec((1, Np), lambda i, k: (0, 0)),
            ],
            out_specs=pl.BlockSpec((TM, Np), lambda i, k: (i, 0)),
        ),
        compiler_params=pltpu.CompilerParams(
            dimension_semantics=("parallel", "arbitrary"),
            vmem_limit_bytes=vmem_limit,
        ),
        cost_estimate=pl.CostEstimate(
            flops=2 * Mp * Kp * Np,
            transcendentals=0,
            bytes_accessed=Mp * Kp * 2 + Kp * Np * 2 + Mp * Np * 4,
        ),
    )(patches_p, w_p, b_p)

    # Strip padding, (M, Cout) -> (N, Ho, Wo, Cout) -> NCHW (PyTorch layout).
    out = out_flat[:M, :Cout].reshape(N, Ho, Wo, Cout).transpose(0, 3, 1, 2)
    return out.astype(orig_dtype)


def _reference_conv(x, weight, bias):
    """Plain-JAX f32 reference (same semantics as PyTorch Conv2d)."""
    out = lax.conv_general_dilated(
        x, weight,
        window_strides=(STRIDE, STRIDE),
        padding=((PAD, PAD), (PAD, PAD)),
        dimension_numbers=("NCHW", "OIHW", "NCHW"),
        precision=lax.Precision.HIGHEST,
    )
    return out + bias.reshape(1, -1, 1, 1)


if __name__ == "__main__":
    key = jax.random.PRNGKey(0)
    kx, kw_, kb = jax.random.split(key, 3)

    # ---- test 1: small module-sized shapes ----------------------------------
    N, Cin, Cout, H, W = 2, 4, 8, 16, 16
    x = jax.random.normal(kx, (N, Cin, H, W), dtype=jnp.float32)
    fan_in = Cin * KH * KW
    bound = float(np.sqrt(1.0 / fan_in))
    weight = jax.random.uniform(kw_, (Cout, Cin, KH, KW), jnp.float32, -bound, bound)
    bias = jax.random.uniform(kb, (Cout,), jnp.float32, -bound, bound)

    out = jax.block_until_ready(downsample_forward(x, weight, bias))
    ref = jax.block_until_ready(_reference_conv(x, weight, bias))
    assert out.shape == (N, Cout, H // 2, W // 2), out.shape
    # bf16 operands -> loosened tolerance vs. the f32 reference (intentional).
    np.testing.assert_allclose(np.asarray(out), np.asarray(ref), rtol=3e-2, atol=3e-2)

    # ---- test 2: multi-step grid (Mt>1, Kt>1, M padding) + resident-weight
    # K slicing, and the streamed-weight fallback path -------------------------
    N2, Cin2, Cout2, H2, W2 = 2, 16, 24, 14, 14
    k2 = jax.random.split(jax.random.PRNGKey(1), 3)
    x2 = jax.random.normal(k2[0], (N2, Cin2, H2, W2), dtype=jnp.float32)
    fan_in2 = Cin2 * KH * KW
    bound2 = float(np.sqrt(1.0 / fan_in2))
    w2 = jax.random.uniform(k2[1], (Cout2, Cin2, KH, KW), jnp.float32, -bound2, bound2)
    b2 = jax.random.uniform(k2[2], (Cout2,), jnp.float32, -bound2, bound2)
    ref2 = jax.block_until_ready(_reference_conv(x2, w2, b2))

    out2 = jax.block_until_ready(downsample_forward(x2, w2, b2, tm=64, tk=128))
    assert out2.shape == (N2, Cout2, H2 // 2, W2 // 2), out2.shape
    np.testing.assert_allclose(np.asarray(out2), np.asarray(ref2), rtol=3e-2, atol=3e-2)

    out3 = jax.block_until_ready(
        downsample_forward(x2, w2, b2, tm=64, tk=128, weight_resident=False)
    )
    np.testing.assert_allclose(np.asarray(out3), np.asarray(ref2), rtol=3e-2, atol=3e-2)

    print("KERNEL_OK")
</pallas_src>

<mosaic_0001>
module attributes {stable_mosaic.version = 11 : i64} {
  func.func @_conv_gemm_kernel(%arg0: i32, %arg1: i32, %arg2: memref<128x128xbf16, #tpu.memory_space<vmem>>, %arg3: memref<128x128xbf16, #tpu.memory_space<vmem>>, %arg4: memref<1x128xf32, #tpu.memory_space<vmem>>, %arg5: memref<128x128xf32, #tpu.memory_space<vmem>>) attributes {dimension_semantics = [#tpu.dimension_semantics<parallel>, #tpu.dimension_semantics<arbitrary>], iteration_bounds = array<i64: 1, 1>, scalar_prefetch = 0 : i64, scratch_operands = 0 : i64, tpu.core_type = #tpu.core_type<tc>, window_params = [{transform_indices = @transform_0, window_bounds = array<i64: 128, 128>}, {pipeline_mode = #tpu.pipeline_mode<synchronous>, transform_indices = @transform_1, window_bounds = array<i64: 128, 128>}, {pipeline_mode = #tpu.pipeline_mode<synchronous>, transform_indices = @transform_2, window_bounds = array<i64: 1, 128>}, {transform_indices = @transform_3, window_bounds = array<i64: 128, 128>}]} {
    %c0_i32 = arith.constant 0 : i32
    %0 = arith.cmpi eq, %arg1, %c0_i32 : i32
    %1 = arith.extui %0 : i1 to i32
    %c0_i32_0 = arith.constant 0 : i32
    %2 = arith.cmpi ne, %1, %c0_i32_0 : i32
    scf.if %2 {
      %c0_7 = arith.constant 0 : index
      %c0_8 = arith.constant 0 : index
      %12 = vector.load %arg4[%c0_7, %c0_8] : memref<1x128xf32, #tpu.memory_space<vmem>>, vector<1x128xf32>
      %13 = vector.shape_cast %12 : vector<1x128xf32> to vector<1x128xf32>
      %14 = vector.broadcast %13 : vector<1x128xf32> to vector<128x128xf32>
      %c0_9 = arith.constant 0 : index
      %c0_10 = arith.constant 0 : index
      %15 = vector.load %arg5[%c0_9, %c0_10] : memref<128x128xf32, #tpu.memory_space<vmem>>, vector<128x128xf32>
      tpu.vector_store %arg5[%c0_9, %c0_10], %14 {strides = array<i32>} : memref<128x128xf32, #tpu.memory_space<vmem>>, vector<128x128xf32>,
    } else {
    }
    %c128_i32 = arith.constant 128 : i32
    %3 = arith.muli %arg1, %c128_i32 : i32
    %4 = tpu.assume_multiple %3, 128 : i32
    %5 = arith.index_cast %4 : i32 to index
    %c0 = arith.constant 0 : index
    %6 = vector.load %arg3[%5, %c0] : memref<128x128xbf16, #tpu.memory_space<vmem>>, vector<128x128xbf16>
    %c0_1 = arith.constant 0 : index
    %c0_2 = arith.constant 0 : index
    %7 = vector.load %arg5[%c0_1, %c0_2] : memref<128x128xf32, #tpu.memory_space<vmem>>, vector<128x128xf32>
    %c0_3 = arith.constant 0 : index
    %c0_4 = arith.constant 0 : index
    %8 = vector.load %arg2[%c0_3, %c0_4] : memref<128x128xbf16, #tpu.memory_space<vmem>>, vector<128x128xbf16>
    %cst = arith.constant dense<0.000000e+00> : vector<128x128xf32>
    %9 = tpu.matmul %8, %6, %cst {dimension_numbers = #tpu.dot_dimension_numbers<[1], [0], [0], [1], [0, 0, 1, 1], [], []>} : vector<128x128xbf16>, vector<128x128xbf16>, vector<128x128xf32> -> vector<128x128xf32>
    %10 = arith.addf %7, %9 : vector<128x128xf32>
    %c0_5 = arith.constant 0 : index
    %c0_6 = arith.constant 0 : index
    %11 = vector.load %arg5[%c0_5, %c0_6] : memref<128x128xf32, #tpu.memory_space<vmem>>, vector<128x128xf32>
    tpu.vector_store %arg5[%c0_5, %c0_6], %10 {strides = array<i32>} : memref<128x128xf32, #tpu.memory_space<vmem>>, vector<128x128xf32>,
    return
  }
  func.func @transform_0(%arg0: i32, %arg1: i32) -> (i32, i32) {
    %c0_i32 = arith.constant 0 : i32
    return %arg0, %arg1 : i32, i32
  }
  func.func @transform_1(%arg0: i32, %arg1: i32) -> (i32, i32) {
    %c0_i32 = arith.constant 0 : i32
    %c0_i32_0 = arith.constant 0 : i32
    %c0_i32_1 = arith.constant 0 : i32
    return %c0_i32, %c0_i32_0 : i32, i32
  }
  func.func @transform_2(%arg0: i32, %arg1: i32) -> (i32, i32) {
    %c0_i32 = arith.constant 0 : i32
    %c0_i32_0 = arith.constant 0 : i32
    %c0_i32_1 = arith.constant 0 : i32
    return %c0_i32, %c0_i32_0 : i32, i32
  }
  func.func @transform_3(%arg0: i32, %arg1: i32) -> (i32, i32) {
    %c0_i32 = arith.constant 0 : i32
    %c0_i32_0 = arith.constant 0 : i32
    return %arg0, %c0_i32 : i32, i32
  }
}

</mosaic_0001>

<llo_original>
// kernel: downsample_forward.1
$region0: #{downsample_forward.1}
  #allocation0 [shape = 'u32[]', space=smem, size = 0x4, offset = 0x4, fixed_abs, tag = 'smem constant byte address 0x4 - core index']
  #allocation1 [shape = 'u32[144,128]{1,0:T(1,128)}', space=vmem, size = 0x12000, scoped, tag = 'internal scratch']
  %s0 = inlined_call_operand.vmem [shape: bf16[128,128], index: 0, kind: input, shape index: {}]
  %s1 = inlined_call_operand.vmem [shape: bf16[128,128], index: 1, kind: input, shape index: {}]
  %s2 = inlined_call_operand.vmem [shape: f32[1,128], index: 2, kind: input, shape index: {}]
  %s3 = inlined_call_operand.vmem [shape: f32[128,128], index: 3, kind: output, shape index: {}]
  %s4 = sld [smem:[#allocation0]]
  $region26: #{downsample_forward.1} parent=0
    _
  %s6 = ssub.s32 1, %s4
  %s7 = scalar_select 0, %s6, %s4
  // Predicated region
  $region2: #{downsample_forward.1} parent=0 // pred_check
    _
  $region3: #{downsample_forward.1} parent=0 // pred_check_branch
    %9 = sbr.rel (0) target = $region5
  $region4: #{downsample_forward.1} parent=0 // pred_region
    _
  $region5: #{downsample_forward.1} parent=0 // pred_fallthru
    _
  // Predicated region
  $region6: #{downsample_forward.1} parent=0 // pred_check
    _
  $region7: #{downsample_forward.1} parent=0 // pred_check_branch
    %11 = sbr.rel (0) target = $region9
  $region8: #{downsample_forward.1} parent=0 // pred_region
    _
  $region9: #{downsample_forward.1} parent=0 // pred_fallthru
    _
  // Predicated region
  $region10: #{downsample_forward.1} parent=0 // pred_check
    _
  $region11: #{downsample_forward.1} parent=0 // pred_check_branch
    %13 = sbr.rel (0) target = $region13
  $region12: #{downsample_forward.1} parent=0 // pred_region
    _
  $region13: #{downsample_forward.1} parent=0 // pred_fallthru
    _
  %p15 = scmp.eq.s32.totalorder 0, 0
  // Predicated region
  $region14: #{downsample_forward.1} parent=0 // pred_check
    %p16 = pneg %p15
  $region15: #{downsample_forward.1} parent=0 // pred_check_branch
    %18 = sbr.rel (%p16) target = $region17
  $region16: #{downsample_forward.1} parent=0 // pred_region
    %v19 = vld [vmem:[%s2] sm:$0x1]
    %v21 = vlaneseq
    %v22 = vshrl.u32 %v21, 7
    %v23 = vsub.s32 0, %v22
    %v24 = vrot.slane %v19, %v23
    %26 = vst [vmem:[%s3] sm:$0xff] %v24
    %27 = vst [vmem:[%s3 + $0x8] sm:$0xff] %v24
    %28 = vst [vmem:[%s3 + $0x10] sm:$0xff] %v24
    %29 = vst [vmem:[%s3 + $0x18] sm:$0xff] %v24
    %30 = vst [vmem:[%s3 + $0x20] sm:$0xff] %v24
    %31 = vst [vmem:[%s3 + $0x28] sm:$0xff] %v24
    %32 = vst [vmem:[%s3 + $0x30] sm:$0xff] %v24
    %33 = vst [vmem:[%s3 + $0x38] sm:$0xff] %v24
    %34 = vst [vmem:[%s3 + $0x40] sm:$0xff] %v24
    %35 = vst [vmem:[%s3 + $0x48] sm:$0xff] %v24
    %36 = vst [vmem:[%s3 + $0x50] sm:$0xff] %v24
    %37 = vst [vmem:[%s3 + $0x58] sm:$0xff] %v24
    %38 = vst [vmem:[%s3 + $0x60] sm:$0xff] %v24
    %39 = vst [vmem:[%s3 + $0x68] sm:$0xff] %v24
    %40 = vst [vmem:[%s3 + $0x70] sm:$0xff] %v24
    %41 = vst [vmem:[%s3 + $0x78] sm:$0xff] %v24
  $region17: #{downsample_forward.1} parent=0 // pred_fallthru
    _
  %s42 = smul.u32 0, 128
  %s43 = sshra.s32 %s42, 3
  %s44 = sand.u32 %s42, 7
  %s45 = smul.addr %s43, 4
  %s46 = scalar_lea.vmem %s1, %s45
  %v47 = vld [vmem:[%s46] sm:$0xf]
  %v48 = vld [vmem:[%s46 + $0x4] sm:$0xf]
  %v49 = vld [vmem:[%s46 + $0x8] sm:$0xf]
  %v50 = vld [vmem:[%s46 + $0xc] sm:$0xf]
  %v51 = vld [vmem:[%s46 + $0x10] sm:$0xf]
  %v52 = vld [vmem:[%s46 + $0x14] sm:$0xf]
  %v53 = vld [vmem:[%s46 + $0x18] sm:$0xf]
  %v54 = vld [vmem:[%s46 + $0x1c] sm:$0xf]
  %v55 = vld [vmem:[%s46 + $0x20] sm:$0xf]
  %v56 = vld [vmem:[%s46 + $0x24] sm:$0xf]
  %v57 = vld [vmem:[%s46 + $0x28] sm:$0xf]
  %v58 = vld [vmem:[%s46 + $0x2c] sm:$0xf]
  %v59 = vld [vmem:[%s46 + $0x30] sm:$0xf]
  %v60 = vld [vmem:[%s46 + $0x34] sm:$0xf]
  %v61 = vld [vmem:[%s46 + $0x38] sm:$0xf]
  %v62 = vld [vmem:[%s46 + $0x3c] sm:$0xf]
  %v63 = vld [vmem:[%s3] sm:$0xff]
  %v64 = vld [vmem:[%s3 + $0x8] sm:$0xff]
  %v65 = vld [vmem:[%s3 + $0x10] sm:$0xff]
  %v66 = vld [vmem:[%s3 + $0x18] sm:$0xff]
  %v67 = vld [vmem:[%s3 + $0x20] sm:$0xff]
  %v68 = vld [vmem:[%s3 + $0x28] sm:$0xff]
  %v69 = vld [vmem:[%s3 + $0x30] sm:$0xff]
  %v70 = vld [vmem:[%s3 + $0x38] sm:$0xff]
  %v71 = vld [vmem:[%s3 + $0x40] sm:$0xff]
  %v72 = vld [vmem:[%s3 + $0x48] sm:$0xff]
  %v73 = vld [vmem:[%s3 + $0x50] sm:$0xff]
  %v74 = vld [vmem:[%s3 + $0x58] sm:$0xff]
  %v75 = vld [vmem:[%s3 + $0x60] sm:$0xff]
  %v76 = vld [vmem:[%s3 + $0x68] sm:$0xff]
  %v77 = vld [vmem:[%s3 + $0x70] sm:$0xff]
  %v78 = vld [vmem:[%s3 + $0x78] sm:$0xff]
  %v79 = vld [vmem:[%s0] sm:$0xf]
  %v80 = vld [vmem:[%s0 + $0x4] sm:$0xf]
  %v81 = vld [vmem:[%s0 + $0x8] sm:$0xf]
  %v82 = vld [vmem:[%s0 + $0xc] sm:$0xf]
  %v83 = vld [vmem:[%s0 + $0x10] sm:$0xf]
  %v84 = vld [vmem:[%s0 + $0x14] sm:$0xf]
  %v85 = vld [vmem:[%s0 + $0x18] sm:$0xf]
  %v86 = vld [vmem:[%s0 + $0x1c] sm:$0xf]
  %v87 = vld [vmem:[%s0 + $0x20] sm:$0xf]
  %v88 = vld [vmem:[%s0 + $0x24] sm:$0xf]
  %v89 = vld [vmem:[%s0 + $0x28] sm:$0xf]
  %v90 = vld [vmem:[%s0 + $0x2c] sm:$0xf]
  %v91 = vld [vmem:[%s0 + $0x30] sm:$0xf]
  %v92 = vld [vmem:[%s0 + $0x34] sm:$0xf]
  %v93 = vld [vmem:[%s0 + $0x38] sm:$0xf]
  %v94 = vld [vmem:[%s0 + $0x3c] sm:$0xf]
  %v111 = vunpack.c.l.b16 %v79
  %v112 = vunpack.c.l.b16 %v80
  %v113 = vunpack.c.l.b16 %v81
  %v114 = vunpack.c.l.b16 %v82
  %v115 = vunpack.c.l.b16 %v83
  %v116 = vunpack.c.l.b16 %v84
  %v117 = vunpack.c.l.b16 %v85
  %v118 = vunpack.c.l.b16 %v86
  %v119 = vunpack.c.l.b16 %v87
  %v120 = vunpack.c.l.b16 %v88
  %v121 = vunpack.c.l.b16 %v89
  %v122 = vunpack.c.l.b16 %v90
  %v123 = vunpack.c.l.b16 %v91
  %v124 = vunpack.c.l.b16 %v92
  %v125 = vunpack.c.l.b16 %v93
  %v126 = vunpack.c.l.b16 %v94
  %v127 = vpack.c.b16 %v112, %v111
  %v128 = vpack.c.b16 %v114, %v113
  %v129 = vpack.c.b16 %v116, %v115
  %v130 = vpack.c.b16 %v118, %v117
  %v131 = vpack.c.b16 %v120, %v119
  %v132 = vpack.c.b16 %v122, %v121
  %v133 = vpack.c.b16 %v124, %v123
  %v134 = vpack.c.b16 %v126, %v125
  %v159 = vunpack.c.l.b16 %v47
  %v160 = vunpack.c.l.b16 %v48
  %v161 = vunpack.c.l.b16 %v49
  %v162 = vunpack.c.l.b16 %v50
  %v163 = vunpack.c.l.b16 %v51
  %v164 = vunpack.c.l.b16 %v52
  %v165 = vunpack.c.l.b16 %v53
  %v166 = vunpack.c.l.b16 %v54
  %v167 = vunpack.c.l.b16 %v55
  %v168 = vunpack.c.l.b16 %v56
  %v169 = vunpack.c.l.b16 %v57
  %v170 = vunpack.c.l.b16 %v58
  %v171 = vunpack.c.l.b16 %v59
  %v172 = vunpack.c.l.b16 %v60
  %v173 = vunpack.c.l.b16 %v61
  %v174 = vunpack.c.l.b16 %v62
  %v175 = vpack.c.b16 %v160, %v159
  %v176 = vpack.c.b16 %v162, %v161
  %v177 = vpack.c.b16 %v164, %v163
  %v178 = vpack.c.b16 %v166, %v165
  %v179 = vpack.c.b16 %v168, %v167
  %v180 = vpack.c.b16 %v170, %v169
  %v181 = vpack.c.b16 %v172, %v171
  %v182 = vpack.c.b16 %v174, %v173
  %191 = vmatprep.subr.bf16.mxu0 0
  %192 = vmatpush1.bf16.msra.mxu0 %v182
  %193 = vmatprep.subr.bf16.mxu0 0
  %194 = vmatpush1.bf16.msra.mxu0 %v181
  %195 = vmatprep.subr.bf16.mxu0 0
  %196 = vmatpush1.bf16.msra.mxu0 %v180
  %197 = vmatprep.subr.bf16.mxu0 0
  %198 = vmatpush1.bf16.msra.mxu0 %v179
  %199 = vmatprep.subr.bf16.mxu0 0
  %200 = vmatpush1.bf16.msra.mxu0 %v178
  %201 = vmatprep.subr.bf16.mxu0 0
  %202 = vmatpush1.bf16.msra.mxu0 %v177
  %203 = vmatprep.subr.bf16.mxu0 0
  %204 = vmatpush1.bf16.msra.mxu0 %v176
  %205 = vmatprep.subr.bf16.mxu0 0
  %206 = vmatpush1.bf16.msra.mxu0 %v175
  %207 = vmatprep.subr.bf16.mxu0 0
  %208 = vmatpush2.bf16.msra.mxu0 0
  %209 = vmatprep.subr.bf16.mxu0 0
  %210 = vmatpush2.bf16.msra.mxu0 0
  %211 = vmatprep.subr.bf16.mxu0 0
  %212 = vmatpush2.bf16.msra.mxu0 0
  %213 = vmatprep.subr.bf16.mxu0 0
  %214 = vmatpush2.bf16.msra.mxu0 0
  %215 = vmatprep.subr.bf16.mxu0 0
  %216 = vmatpush2.bf16.msra.mxu0 0
  %217 = vmatprep.subr.bf16.mxu0 0
  %218 = vmatpush2.bf16.msra.mxu0 0
  %219 = vmatprep.subr.bf16.mxu0 0
  %220 = vmatpush2.bf16.msra.mxu0 0
  %221 = vmatprep.subr.bf16.mxu0 0
  %222 = vmatpush2.bf16.msra.mxu0 0
  %223 = vmatprep.mubr.bf16.mxu0 0
  %224 = vmatmul.mubr.bf16.gmra.mxu0 %v127
  %v225 = vpop.f32.mrf.mxu0
  %v226 = vadd.f32 0.0, %v225
  %v227 = vpop.f32.mrf.mxu0
  %v228 = vpop.f32.mrf.mxu0
  %v229 = vadd.f32 0.0, %v228
  %v230 = vpop.f32.mrf.mxu0
  %231 = vmatprep.mubr.bf16.mxu0 0
  %232 = vmatmul.mubr.bf16.gmra.mxu0 %v128
  %v233 = vpop.f32.mrf.mxu0
  %v234 = vadd.f32 0.0, %v233
  %v235 = vpop.f32.mrf.mxu0
  %v236 = vpop.f32.mrf.mxu0
  %v237 = vadd.f32 0.0, %v236
  %v238 = vpop.f32.mrf.mxu0
  %239 = vmatprep.mubr.bf16.mxu0 0
  %240 = vmatmul.mubr.bf16.gmra.mxu0 %v129
  %v241 = vpop.f32.mrf.mxu0
  %v242 = vadd.f32 0.0, %v241
  %v243 = vpop.f32.mrf.mxu0
  %v244 = vpop.f32.mrf.mxu0
  %v245 = vadd.f32 0.0, %v244
  %v246 = vpop.f32.mrf.mxu0
  %247 = vmatprep.mubr.bf16.mxu0 0
  %248 = vmatmul.mubr.bf16.gmra.mxu0 %v130
  %v249 = vpop.f32.mrf.mxu0
  %v250 = vadd.f32 0.0, %v249
  %v251 = vpop.f32.mrf.mxu0
  %v252 = vpop.f32.mrf.mxu0
  %v253 = vadd.f32 0.0, %v252
  %v254 = vpop.f32.mrf.mxu0
  %255 = vmatprep.mubr.bf16.mxu0 0
  %256 = vmatmul.mubr.bf16.gmra.mxu0 %v131
  %v257 = vpop.f32.mrf.mxu0
  %v258 = vadd.f32 0.0, %v257
  %v259 = vpop.f32.mrf.mxu0
  %v260 = vpop.f32.mrf.mxu0
  %v261 = vadd.f32 0.0, %v260
  %v262 = vpop.f32.mrf.mxu0
  %263 = vmatprep.mubr.bf16.mxu0 0
  %264 = vmatmul.mubr.bf16.gmra.mxu0 %v132
  %v265 = vpop.f32.mrf.mxu0
  %v266 = vadd.f32 0.0, %v265
  %v267 = vpop.f32.mrf.mxu0
  %v268 = vpop.f32.mrf.mxu0
  %v269 = vadd.f32 0.0, %v268
  %v270 = vpop.f32.mrf.mxu0
  %271 = vmatprep.mubr.bf16.mxu0 0
  %272 = vmatmul.mubr.bf16.gmra.mxu0 %v133
  %v273 = vpop.f32.mrf.mxu0
  %v274 = vadd.f32 0.0, %v273
  %v275 = vpop.f32.mrf.mxu0
  %v276 = vpop.f32.mrf.mxu0
  %v277 = vadd.f32 0.0, %v276
  %v278 = vpop.f32.mrf.mxu0
  %279 = vmatprep.mubr.bf16.mxu0 0
  %280 = vmatmul.mubr.bf16.gmra.mxu0 %v134
  %v281 = vpop.f32.mrf.mxu0
  %v282 = vadd.f32 0.0, %v281
  %v283 = vpop.f32.mrf.mxu0
  %v284 = vpop.f32.mrf.mxu0
  %v285 = vadd.f32 0.0, %v284
  %v286 = vpop.f32.mrf.mxu0
  %287 = vdwg.mxu0
  %v288 = vadd.f32 %v63, %v226
  %v289 = vadd.f32 %v64, %v229
  %v290 = vadd.f32 %v65, %v234
  %v291 = vadd.f32 %v66, %v237
  %v292 = vadd.f32 %v67, %v242
  %v293 = vadd.f32 %v68, %v245
  %v294 = vadd.f32 %v69, %v250
  %v295 = vadd.f32 %v70, %v253
  %v296 = vadd.f32 %v71, %v258
  %v297 = vadd.f32 %v72, %v261
  %v298 = vadd.f32 %v73, %v266
  %v299 = vadd.f32 %v74, %v269
  %v300 = vadd.f32 %v75, %v274
  %v301 = vadd.f32 %v76, %v277
  %v302 = vadd.f32 %v77, %v282
  %v303 = vadd.f32 %v78, %v285
  %304 = vst [vmem:[%s3] sm:$0xff] %v288
  %305 = vst [vmem:[%s3 + $0x8] sm:$0xff] %v289
  %306 = vst [vmem:[%s3 + $0x10] sm:$0xff] %v290
  %307 = vst [vmem:[%s3 + $0x18] sm:$0xff] %v291
  %308 = vst [vmem:[%s3 + $0x20] sm:$0xff] %v292
  %309 = vst [vmem:[%s3 + $0x28] sm:$0xff] %v293
  %310 = vst [vmem:[%s3 + $0x30] sm:$0xff] %v294
  %311 = vst [vmem:[%s3 + $0x38] sm:$0xff] %v295
  %312 = vst [vmem:[%s3 + $0x40] sm:$0xff] %v296
  %313 = vst [vmem:[%s3 + $0x48] sm:$0xff] %v297
  %314 = vst [vmem:[%s3 + $0x50] sm:$0xff] %v298
  %315 = vst [vmem:[%s3 + $0x58] sm:$0xff] %v299
  %316 = vst [vmem:[%s3 + $0x60] sm:$0xff] %v300
  %317 = vst [vmem:[%s3 + $0x68] sm:$0xff] %v301
  %318 = vst [vmem:[%s3 + $0x70] sm:$0xff] %v302
  %319 = vst [vmem:[%s3 + $0x78] sm:$0xff] %v303
  // Predicated region
  $region18: #{downsample_forward.1} parent=0 // pred_check
    _
  $region19: #{downsample_forward.1} parent=0 // pred_check_branch
    %321 = sbr.rel (0) target = $region21
  $region20: #{downsample_forward.1} parent=0 // pred_region
    _
  $region21: #{downsample_forward.1} parent=0 // pred_fallthru
    _
  // Predicated region
  $region22: #{downsample_forward.1} parent=0 // pred_check
    _
  $region23: #{downsample_forward.1} parent=0 // pred_check_branch
    %323 = sbr.rel (0) target = $region25
  $region24: #{downsample_forward.1} parent=0 // pred_region
    _
  $region25: #{downsample_forward.1} parent=0 // pred_fallthru
    _

</llo_original>
